<compile_context>
chip_gen: v5e
topology: v5e:2x2
jax: 0.10.0
libtpu: 0.0.40
codegen_flags: <defaults>
</compile_context>

<pallas_src>
import jax
import jax.numpy as jnp
from jax.experimental import pallas as pl
from jax.experimental.pallas import tpu as pltpu


def _tanh_replicate_kernel(x_ref, o_ref, t_ref):
    # x_ref: (tm, tn) input tile  -- same tile revisited for r = 0, 1, 2
    # o_ref: (tm, tn) output tile -- column offset r*CD + j*tn
    # t_ref: (tm, tn) VMEM scratch holding tanh(x) for the current (i, j) tile
    r = pl.program_id(2)

    @pl.when(r == 0)
    def _():
        # Compute tanh once per input tile (f32 math; explicit for bf16/v5e),
        # then reuse it for all three output replicas.
        t_ref[...] = jnp.tanh(x_ref[...].astype(jnp.float32)).astype(t_ref.dtype)

    o_ref[...] = t_ref[...]


def _pick_col_tile(cd):
    for tn in (2048, 1024, 512, 256, 128):
        if cd % tn == 0:
            return tn
    return None


def _cat3_tanh_pallas(flat):
    """flat: (B, CD) -> (B, 3*CD) = tanh(flat) replicated 3x along columns."""
    B, CD = flat.shape
    tn = _pick_col_tile(CD)
    assert tn is not None, "caller must guarantee CD % 128 == 0"

    tm = B if B <= 256 else 256            # full dim (always legal) or multiple of 8
    n_rows = pl.cdiv(B, tm)
    n_cols = CD // tn
    grid = (n_rows, n_cols, 3)             # replica axis innermost

    in_spec = pl.BlockSpec((tm, tn), lambda i, j, r: (i, j))
    out_spec = pl.BlockSpec((tm, tn), lambda i, j, r: (i, r * n_cols + j))

    return pl.pallas_call(
        _tanh_replicate_kernel,
        out_shape=jax.ShapeDtypeStruct((B, 3 * CD), flat.dtype),
        grid_spec=pltpu.PrefetchScalarGridSpec(
            num_scalar_prefetch=0,
            grid=grid,
            in_specs=[in_spec],
            out_specs=out_spec,
            scratch_shapes=[pltpu.VMEM((tm, tn), flat.dtype)],
        ),
        compiler_params=pltpu.CompilerParams(
            dimension_semantics=("parallel", "parallel", "arbitrary"),
            vmem_limit_bytes=32 * 1024 * 1024,
        ),
    )(flat)


_SMALL_THRESHOLD = 16 * 1024  # elements; below this, XLA fusion beats a kernel


def model_forward(x):
    """Equivalent of torch: cat((x, x, x), dim=1).view(B, -1).tanh()."""
    B = x.shape[0]
    flat = x.reshape(B, -1)                # free layout plumbing in the wrapper
    CD = flat.shape[1]
    if flat.size < _SMALL_THRESHOLD or CD % 128 != 0:
        # Tiny / lane-unaligned shapes: per-step + launch overhead dwarfs the work.
        return jnp.tanh(jnp.tile(flat, (1, 3)))
    return _cat3_tanh_pallas(flat)


def model_forward_ref(x):
    # Pure-JAX reference mirroring the PyTorch module.
    B = x.shape[0]
    y = jnp.concatenate([x, x, x], axis=1)
    return jnp.tanh(y.reshape(B, -1))


if __name__ == "__main__":
    key = jax.random.PRNGKey(0)
    k1, k2 = jax.random.split(key)

    # 1) Exact shape from the PyTorch spec: torch.randn(2, 3, 4) -> (2, 36).
    x_small = jax.random.normal(k1, (2, 3, 4), dtype=jnp.float32)
    out_small = jax.block_until_ready(model_forward(x_small))
    ref_small = model_forward_ref(x_small)
    assert out_small.shape == (2, 36), out_small.shape
    assert jnp.allclose(out_small, ref_small, atol=1e-5, rtol=1e-5)

    # 2) Small-but-aligned shape that exercises the Pallas kernel directly:
    #    (8, 64, 128) -> flat (8, 8192), grid (1, 4, 3), tiles (8, 2048).
    x_big = jax.random.normal(k2, (8, 64, 128), dtype=jnp.float32)
    flat_big = x_big.reshape(8, -1)
    out_big = jax.block_until_ready(_cat3_tanh_pallas(flat_big))
    ref_big = model_forward_ref(x_big)
    assert out_big.shape == (8, 3 * 64 * 128), out_big.shape
    assert jnp.allclose(out_big, ref_big, atol=1e-5, rtol=1e-5)

    # 3) Same large shape through the dispatcher (also takes the Pallas path).
    out_big2 = jax.block_until_ready(model_forward(x_big))
    assert jnp.allclose(out_big2, ref_big, atol=1e-5, rtol=1e-5)

    print("KERNEL_OK")
</pallas_src>

<mosaic_0001>
module attributes {stable_mosaic.version = 11 : i64} {
  func.func @_tanh_replicate_kernel(%arg0: i32, %arg1: i32, %arg2: i32, %arg3: memref<8x2048xf32, #tpu.memory_space<vmem>>, %arg4: memref<8x2048xf32, #tpu.memory_space<vmem>>, %arg5: memref<8x2048xf32, #tpu.memory_space<vmem>>) attributes {dimension_semantics = [#tpu.dimension_semantics<parallel>, #tpu.dimension_semantics<parallel>, #tpu.dimension_semantics<arbitrary>], iteration_bounds = array<i64: 1, 4, 3>, scalar_prefetch = 0 : i64, scratch_operands = 1 : i64, tpu.core_type = #tpu.core_type<tc>, window_params = [{transform_indices = @transform_0, window_bounds = array<i64: 8, 2048>}, {transform_indices = @transform_1, window_bounds = array<i64: 8, 2048>}]} {
    %c0_i32 = arith.constant 0 : i32
    %0 = arith.cmpi eq, %arg2, %c0_i32 : i32
    %1 = arith.extui %0 : i1 to i32
    %c0_i32_0 = arith.constant 0 : i32
    %2 = arith.cmpi ne, %1, %c0_i32_0 : i32
    scf.if %2 {
      %c0_4 = arith.constant 0 : index
      %c0_5 = arith.constant 0 : index
      %5 = vector.load %arg3[%c0_4, %c0_5] : memref<8x2048xf32, #tpu.memory_space<vmem>>, vector<8x2048xf32>
      %6 = math.tanh %5 : vector<8x2048xf32>
      %c0_6 = arith.constant 0 : index
      %c0_7 = arith.constant 0 : index
      %7 = vector.load %arg5[%c0_6, %c0_7] : memref<8x2048xf32, #tpu.memory_space<vmem>>, vector<8x2048xf32>
      tpu.vector_store %arg5[%c0_6, %c0_7], %6 {strides = array<i32>} : memref<8x2048xf32, #tpu.memory_space<vmem>>, vector<8x2048xf32>,
    } else {
    }
    %c0 = arith.constant 0 : index
    %c0_1 = arith.constant 0 : index
    %3 = vector.load %arg5[%c0, %c0_1] : memref<8x2048xf32, #tpu.memory_space<vmem>>, vector<8x2048xf32>
    %c0_2 = arith.constant 0 : index
    %c0_3 = arith.constant 0 : index
    %4 = vector.load %arg4[%c0_2, %c0_3] : memref<8x2048xf32, #tpu.memory_space<vmem>>, vector<8x2048xf32>
    tpu.vector_store %arg4[%c0_2, %c0_3], %3 {strides = array<i32>} : memref<8x2048xf32, #tpu.memory_space<vmem>>, vector<8x2048xf32>,
    return
  }
  func.func @transform_0(%arg0: i32, %arg1: i32, %arg2: i32) -> (i32, i32) {
    %c0_i32 = arith.constant 0 : i32
    return %arg0, %arg1 : i32, i32
  }
  func.func @transform_1(%arg0: i32, %arg1: i32, %arg2: i32) -> (i32, i32) {
    %c4_i32 = arith.constant 4 : i32
    %0 = arith.muli %arg2, %c4_i32 : i32
    %1 = arith.addi %0, %arg1 : i32
    %c0_i32 = arith.constant 0 : i32
    return %arg0, %1 : i32, i32
  }
}

</mosaic_0001>

<llo_original>
// kernel: tpu_custom_call.1
$region0: #{tpu_custom_call.1}
  #allocation0 [shape = 'u32[]', space=smem, size = 0x4, offset = 0x4, fixed_abs, tag = 'smem constant byte address 0x4 - core index']
  #allocation1 [shape = 'u32[72,128]{1,0:T(1,128)}', space=vmem, size = 0x9000, scoped, tag = 'internal scratch']
  #allocation2 [shape = 'f32[8,2048]{1,0:T(8,128)}', space=vmem, size = 0x10000, scoped, tag = 'scratch operand']
  %s0 = inlined_call_operand.hbm [shape: f32[8,8192], index: 0, kind: input, shape index: {}]
  %s1 = inlined_call_operand.hbm [shape: f32[8,24576], index: 1, kind: output, shape index: {}]
  %s2 = sld [smem:[#allocation0]]
  $region45: #{tpu_custom_call.1} parent=0
    _
  %s4 = ssub.s32 1, %s2
  %s5 = scalar_select 0, %s4, %s2
  $region1: #{tpu_custom_call.1} parent=0
    #allocation3 [shape = 'u8[131072]{0}', space=vmem, size = 0x20000, scoped, tag = 'input window, operand 0']
    #allocation4 [shape = 's32[2]{0}', space=sflag, size = 0x8, scoped, tag = 'scoped memory for tpu_custom_call.1']
    #allocation5 [shape = 's32[2]{0}', space=sflag, size = 0x8, scoped, tag = 'scoped memory for tpu_custom_call.1']
    #allocation6 [shape = 'u8[131072]{0}', space=vmem, size = 0x20000, scoped, tag = 'output window, operand 0']
    %6 = vsyncpa [#allocation4], 0
    %s7 = scalar_lea.sflag [#allocation4], 1
    %8 = vsyncpa %s7, 0
    %9 = vsyncpa [#allocation5], 0
    %s10 = scalar_lea.sflag [#allocation5], 1
    %11 = vsyncpa %s10, 0
    loop: start=0, step=1, limit=14
    $region2: #{tpu_custom_call.1} parent=1 // loop_pre_header
      _
    $region3: #{tpu_custom_call.1} parent=1 // loop_header
      %s13 = sphi 0, %s17
      %p14 = scmp.ge.s32.totalorder %s13, 14
      %s20 = sphi 0, %s39
      %s21 = sphi 0, %s35
      %s22 = sphi 0, %s31
      %s23 = sphi 0, %s20
      %s24 = sphi 0, %s21
      %s25 = sphi 0, %s22
      %s26 = sphi 0, %s23
      %s27 = sphi 0, %s24
      %s28 = sphi 0, %s25
      %s44 = sphi 0, %s46
      %s47 = sphi 0, %s44
      %s48 = sphi 0, %s47
      %s64 = sphi 0, %s48
      %s76 = sphi 0, %s78
      %s79 = sphi 0, %s76
      %s80 = sphi 0, %s79
      %s96 = sphi 0, %s80
    $region4: #{tpu_custom_call.1} parent=1 // loop_header_branch
      %16 = sbr.rel (%p14) target = $region8
    $region5: #{tpu_custom_call.1} parent=1 // loop_body
      %s18 = ssub.s32 %s13, 1
      %s19 = ssub.s32 %s13, 2
      %s29 = sadd.s32 1, %s22
      %p30 = scmp.ge.s32.totalorder %s29, 3
      %s31 = scalar_select %p30, 0, %s29
      %s32 = sadd.s32 1, %s21
      %s33 = scalar_select %p30, %s32, %s21
      %p34 = scmp.ge.s32.totalorder %s33, 4
      %s35 = scalar_select %p34, 0, %s33
      %s36 = sadd.s32 1, %s20
      %s37 = scalar_select %p34, %s36, %s20
      %p38 = scmp.ge.s32.totalorder %s37, 1
      %s39 = scalar_select %p38, 0, %s37
      %s40 = ssub.s32 %s20, %s39
      %s41 = ssub.s32 %s21, %s35
      %s42 = sor.u32 %s40, %s41
      %p43 = scmp.eq.s32.totalorder %s42, 0
      %s45 = sadd.s32 %s44, 1
      %s46 = scalar_select %p43, %s44, %s45
      %p49 = pneg %p43
      %p50 = scmp.eq.s32.totalorder %s13, 11
      %p51 = por %p49, %p50
      %p52 = scmp.ne.s32.totalorder %s44, %s47
      %p53 = scmp.eq.s32.totalorder %s13, 0
      %p54 = por %p52, %p53
      %p55 = scmp.ne.s32.totalorder %s44, %s47
      %p56 = scmp.eq.s32.totalorder %s18, 11
      %p57 = por %p55, %p56
      %p58 = scmp.ne.s32.totalorder %s47, %s48
      %p59 = scmp.eq.s32.totalorder %s18, 0
      %p60 = por %p58, %p59
      %p61 = scmp.ne.s32.totalorder %s47, %s48
      %p62 = scmp.eq.s32.totalorder %s19, 11
      %p63 = por %p61, %p62
      %p65 = scmp.ne.s32.totalorder %s48, %s64
      %p66 = scmp.eq.s32.totalorder %s19, 0
      %p67 = por %p65, %p66
      %s68 = smul.u32 %s22, 4
      %s69 = sadd.s32 %s68, %s21
      %s70 = smul.u32 %s31, 4
      %s71 = sadd.s32 %s70, %s35
      %s72 = ssub.s32 %s20, %s39
      %s73 = ssub.s32 %s69, %s71
      %s74 = sor.u32 %s72, %s73
      %p75 = scmp.eq.s32.totalorder %s74, 0
      %s77 = sadd.s32 %s76, 1
      %s78 = scalar_select %p75, %s76, %s77
      %p81 = pneg %p75
      %p82 = scmp.eq.s32.totalorder %s13, 11
      %p83 = por %p81, %p82
      %p84 = scmp.ne.s32.totalorder %s76, %s79
      %p85 = scmp.eq.s32.totalorder %s13, 0
      %p86 = por %p84, %p85
      %p87 = scmp.ne.s32.totalorder %s76, %s79
      %p88 = scmp.eq.s32.totalorder %s18, 11
      %p89 = por %p87, %p88
      %p90 = scmp.ne.s32.totalorder %s79, %s80
      %p91 = scmp.eq.s32.totalorder %s18, 0
      %p92 = por %p90, %p91
      %p93 = scmp.ne.s32.totalorder %s79, %s80
      %p94 = scmp.eq.s32.totalorder %s19, 11
      %p95 = por %p93, %p94
      %p97 = scmp.ne.s32.totalorder %s80, %s96
      %p98 = scmp.eq.s32.totalorder %s19, 0
      %p99 = por %p97, %p98
      %p100 = scmp.le.s32.totalorder 1, %s13
      %p101 = scmp.lt.s32.totalorder %s13, 13
      %p102 = pnand %p100, %p101
      %p103 = pneg %p102
      // Predicated region
      $region9: #{tpu_custom_call.1} parent=5 // pred_check
        _
      $region10: #{tpu_custom_call.1} parent=5 // pred_check_branch
        %105 = sbr.rel (%p102) target = $region12
      $region11: #{tpu_custom_call.1} parent=5 // pred_region
        %s106 = ssub.s32 %s13, 1
      $region12: #{tpu_custom_call.1} parent=5 // pred_fallthru
        _
      %p107 = scmp.lt.s32.totalorder %s13, 12
      // Predicated region
      $region13: #{tpu_custom_call.1} parent=5 // pred_check
        %p108 = pneg %p107
      $region14: #{tpu_custom_call.1} parent=5 // pred_check_branch
        %110 = sbr.rel (%p108) target = $region16
      $region15: #{tpu_custom_call.1} parent=5 // pred_region
        // Predicated region
        $region17: #{tpu_custom_call.1} parent=15 // pred_check
          %p111 = pneg %p54
        $region18: #{tpu_custom_call.1} parent=15 // pred_check_branch
          %113 = sbr.rel (%p111) target = $region20
        $region19: #{tpu_custom_call.1} parent=15 // pred_region
          %s114 = sand.u32 %s44, 1
          %s115 = scalar_lea.sflag [#allocation4], %s114
          %s116 = sand.u32 %s44, 1
          %s117 = smul.addr %s116, 128
          %s118 = scalar_lea.vmem [#allocation3], %s117
          %s119 = smul.u32 16, %s21
          %121 = vsyncadd %s115, 0
          %s122 = smul.addr %s20, 64
          %s123 = sadd.s32 %s119, %s122
          %s124 = smul.addr %s123, 8
          %s125 = scalar_lea.hbm %s0, %s124
          %s127 = sshll.u32 %s125, 4
          %s128 = int_to_ptr.hbm [resolvable:$true] %s127
          %s129 = sshll.u32 %s118, 4
          %s130 = int_to_ptr.vmem [resolvable:$true] %s129
          %132 = dma.hbm_to_vmem [thread:$0]  %s128, 2048, %s130, %s115
        $region20: #{tpu_custom_call.1} parent=15 // pred_fallthru
          _
      $region16: #{tpu_custom_call.1} parent=5 // pred_fallthru
        _
      %p133 = scmp.le.s32.totalorder 1, %s13
      %p134 = scmp.lt.s32.totalorder %s13, 13
      %p135 = pnand %p133, %p134
      %p136 = pneg %p135
      // Predicated region
      $region21: #{tpu_custom_call.1} parent=5 // pred_check
        _
      $region22: #{tpu_custom_call.1} parent=5 // pred_check_branch
        %138 = sbr.rel (%p135) target = $region24
      $region23: #{tpu_custom_call.1} parent=5 // pred_region
        %s139 = ssub.s32 %s13, 1
        %s140 = sand.u32 %s47, 1
        %s141 = scalar_lea.sflag [#allocation4], %s140
        %s142 = sand.u32 %s47, 1
        %s143 = smul.addr %s142, 128
        %s144 = scalar_lea.vmem [#allocation3], %s143
        // Predicated region
        $region25: #{tpu_custom_call.1} parent=23 // pred_check
          %p145 = pneg %p60
        $region26: #{tpu_custom_call.1} parent=23 // pred_check_branch
          %147 = sbr.rel (%p145) target = $region28
        $region27: #{tpu_custom_call.1} parent=23 // pred_region
          %149 = dma.done %s141, 2048
        $region28: #{tpu_custom_call.1} parent=23 // pred_fallthru
          _
        %s150 = sand.u32 %s47, 1
        %s151 = scalar_lea.sflag [#allocation4], %s150
        %s152 = sand.u32 %s47, 1
        %s153 = smul.addr %s152, 128
        %s154 = scalar_lea.vmem [#allocation3], %s153
        %p155 = pneg %p60
        %p156 = pneg %p57
        %p157 = pneg %p92
        %p158 = pneg %p89
        %s159 = sand.u32 %s79, 1
        %s160 = scalar_lea.sflag [#allocation5], %s159
        %s161 = sand.u32 %s79, 1
        %s162 = smul.addr %s161, 128
        %s163 = scalar_lea.vmem [#allocation6], %s162
        %s164 = smul.u32 16, %s24
        %s165 = smul.u32 %s25, 4
        %s166 = sadd.s32 %s165, %s24
        %s167 = smul.u32 16, %s166
        %p168 = scmp.eq.s32.totalorder %s25, 0
        // Predicated region
        $region29: #{tpu_custom_call.1} parent=23 // pred_check
          %p169 = pneg %p168
        $region30: #{tpu_custom_call.1} parent=23 // pred_check_branch
          %171 = sbr.rel (%p169) target = $region32
        $region31: #{tpu_custom_call.1} parent=23 // pred_region
          %v172 = vld [vmem:[%s144] sm:$0xff]
          %v173 = vld [vmem:[%s144 + $0x8] sm:$0xff]
          %v174 = vld [vmem:[%s144 + $0x10] sm:$0xff]
          %v175 = vld [vmem:[%s144 + $0x18] sm:$0xff]
          %v176 = vld [vmem:[%s144 + $0x20] sm:$0xff]
          %v177 = vld [vmem:[%s144 + $0x28] sm:$0xff]
          %v178 = vld [vmem:[%s144 + $0x30] sm:$0xff]
          %v179 = vld [vmem:[%s144 + $0x38] sm:$0xff]
          %v180 = vld [vmem:[%s144 + $0x40] sm:$0xff]
          %v181 = vld [vmem:[%s144 + $0x48] sm:$0xff]
          %v182 = vld [vmem:[%s144 + $0x50] sm:$0xff]
          %v183 = vld [vmem:[%s144 + $0x58] sm:$0xff]
          %v184 = vld [vmem:[%s144 + $0x60] sm:$0xff]
          %v185 = vld [vmem:[%s144 + $0x68] sm:$0xff]
          %v186 = vld [vmem:[%s144 + $0x70] sm:$0xff]
          %v187 = vld [vmem:[%s144 + $0x78] sm:$0xff]
          %v188 = vtanh.pop %v172
          %v189 = vtanh.pop %v173
          %v190 = vtanh.pop %v174
          %v191 = vtanh.pop %v175
          %v192 = vtanh.pop %v176
          %v193 = vtanh.pop %v177
          %v194 = vtanh.pop %v178
          %v195 = vtanh.pop %v179
          %v196 = vtanh.pop %v180
          %v197 = vtanh.pop %v181
          %v198 = vtanh.pop %v182
          %v199 = vtanh.pop %v183
          %v200 = vtanh.pop %v184
          %v201 = vtanh.pop %v185
          %v202 = vtanh.pop %v186
          %v203 = vtanh.pop %v187
          %204 = vst [vmem:[#allocation2] sm:$0xff] %v188
          %205 = vst [vmem:[#allocation2 + $0x8] sm:$0xff] %v189
          %206 = vst [vmem:[#allocation2 + $0x10] sm:$0xff] %v190
          %207 = vst [vmem:[#allocation2 + $0x18] sm:$0xff] %v191
          %208 = vst [vmem:[#allocation2 + $0x20] sm:$0xff] %v192
          %209 = vst [vmem:[#allocation2 + $0x28] sm:$0xff] %v193
          %210 = vst [vmem:[#allocation2 + $0x30] sm:$0xff] %v194
          %211 = vst [vmem:[#allocation2 + $0x38] sm:$0xff] %v195
          %212 = vst [vmem:[#allocation2 + $0x40] sm:$0xff] %v196
          %213 = vst [vmem:[#allocation2 + $0x48] sm:$0xff] %v197
          %214 = vst [vmem:[#allocation2 + $0x50] sm:$0xff] %v198
          %215 = vst [vmem:[#allocation2 + $0x58] sm:$0xff] %v199
          %216 = vst [vmem:[#allocation2 + $0x60] sm:$0xff] %v200
          %217 = vst [vmem:[#allocation2 + $0x68] sm:$0xff] %v201
          %218 = vst [vmem:[#allocation2 + $0x70] sm:$0xff] %v202
          %219 = vst [vmem:[#allocation2 + $0x78] sm:$0xff] %v203
        $region32: #{tpu_custom_call.1} parent=23 // pred_fallthru
          _
        %v220 = vld [vmem:[#allocation2] sm:$0xff]
        %v221 = vld [vmem:[#allocation2 + $0x8] sm:$0xff]
        %v222 = vld [vmem:[#allocation2 + $0x10] sm:$0xff]
        %v223 = vld [vmem:[#allocation2 + $0x18] sm:$0xff]
        %v224 = vld [vmem:[#allocation2 + $0x20] sm:$0xff]
        %v225 = vld [vmem:[#allocation2 + $0x28] sm:$0xff]
        %v226 = vld [vmem:[#allocation2 + $0x30] sm:$0xff]
        %v227 = vld [vmem:[#allocation2 + $0x38] sm:$0xff]
        %v228 = vld [vmem:[#allocation2 + $0x40] sm:$0xff]
        %v229 = vld [vmem:[#allocation2 + $0x48] sm:$0xff]
        %v230 = vld [vmem:[#allocation2 + $0x50] sm:$0xff]
        %v231 = vld [vmem:[#allocation2 + $0x58] sm:$0xff]
        %v232 = vld [vmem:[#allocation2 + $0x60] sm:$0xff]
        %v233 = vld [vmem:[#allocation2 + $0x68] sm:$0xff]
        %v234 = vld [vmem:[#allocation2 + $0x70] sm:$0xff]
        %v235 = vld [vmem:[#allocation2 + $0x78] sm:$0xff]
        %236 = vst [vmem:[%s163] sm:$0xff] %v220
        %237 = vst [vmem:[%s163 + $0x8] sm:$0xff] %v221
        %238 = vst [vmem:[%s163 + $0x10] sm:$0xff] %v222
        %239 = vst [vmem:[%s163 + $0x18] sm:$0xff] %v223
        %240 = vst [vmem:[%s163 + $0x20] sm:$0xff] %v224
        %241 = vst [vmem:[%s163 + $0x28] sm:$0xff] %v225
        %242 = vst [vmem:[%s163 + $0x30] sm:$0xff] %v226
        %243 = vst [vmem:[%s163 + $0x38] sm:$0xff] %v227
        %244 = vst [vmem:[%s163 + $0x40] sm:$0xff] %v228
        %245 = vst [vmem:[%s163 + $0x48] sm:$0xff] %v229
        %246 = vst [vmem:[%s163 + $0x50] sm:$0xff] %v230
        %247 = vst [vmem:[%s163 + $0x58] sm:$0xff] %v231
        %248 = vst [vmem:[%s163 + $0x60] sm:$0xff] %v232
        %249 = vst [vmem:[%s163 + $0x68] sm:$0xff] %v233
        %250 = vst [vmem:[%s163 + $0x70] sm:$0xff] %v234
        %251 = vst [vmem:[%s163 + $0x78] sm:$0xff] %v235
        %s252 = sand.u32 %s79, 1
        %s253 = scalar_lea.sflag [#allocation5], %s252
        %s254 = sand.u32 %s79, 1
        %s255 = smul.addr %s254, 128
        %s256 = scalar_lea.vmem [#allocation6], %s255
        // Predicated region
        $region33: #{tpu_custom_call.1} parent=23 // pred_check
          %p257 = pneg %p89
        $region34: #{tpu_custom_call.1} parent=23 // pred_check_branch
          %259 = sbr.rel (%p257) target = $region36
        $region35: #{tpu_custom_call.1} parent=23 // pred_region
          %s260 = smul.u32 %s25, 4
          %s261 = sadd.s32 %s260, %s24
          %s262 = smul.u32 16, %s261
          %264 = vsyncadd %s253, 0
          %s265 = smul.addr %s23, 192
          %s266 = sadd.s32 %s262, %s265
          %s267 = smul.addr %s266, 8
          %s268 = scalar_lea.hbm %s1, %s267
          %s270 = sshll.u32 %s256, 4
          %s271 = int_to_ptr.vmem [resolvable:$true] %s270
          %s272 = sshll.u32 %s268, 4
          %s273 = int_to_ptr.hbm [resolvable:$true] %s272
          %275 = dma.vmem_to_hbm [thread:$0]  %s271, 2048, %s273, %s253
        $region36: #{tpu_custom_call.1} parent=23 // pred_fallthru
          _
      $region24: #{tpu_custom_call.1} parent=5 // pred_fallthru
        _
      %p276 = scmp.le.s32.totalorder 2, %s13
      // Predicated region
      $region37: #{tpu_custom_call.1} parent=5 // pred_check
        %p277 = pneg %p276
      $region38: #{tpu_custom_call.1} parent=5 // pred_check_branch
        %279 = sbr.rel (%p277) target = $region40
      $region39: #{tpu_custom_call.1} parent=5 // pred_region
        %s280 = ssub.s32 %s13, 2
        // Predicated region
        $region41: #{tpu_custom_call.1} parent=39 // pred_check
          %p281 = pneg %p95
        $region42: #{tpu_custom_call.1} parent=39 // pred_check_branch
          %283 = sbr.rel (%p281) target = $region44
        $region43: #{tpu_custom_call.1} parent=39 // pred_region
          %s284 = sand.u32 %s80, 1
          %s285 = scalar_lea.sflag [#allocation5], %s284
          %s286 = sand.u32 %s80, 1
          %s287 = smul.addr %s286, 128
          %s288 = scalar_lea.vmem [#allocation6], %s287
          %290 = dma.done %s285, 2048
        $region44: #{tpu_custom_call.1} parent=39 // pred_fallthru
          _
      $region40: #{tpu_custom_call.1} parent=5 // pred_fallthru
        _
    $region6: #{tpu_custom_call.1} parent=1 // loop_footer
      %s17 = sadd.s32 1, %s13
    $region7: #{tpu_custom_call.1} parent=1 // loop_footer_branch
      %12 = sbr.rel target = $region3
    $region8: #{tpu_custom_call.1} parent=1 // loop_exit
      _
    %291 = vsyncpa [#allocation4], 1
    %s292 = scalar_lea.sflag [#allocation4], 1
    %293 = vsyncpa %s292, 1
    %294 = vsyncpa [#allocation5], 1
    %s295 = scalar_lea.sflag [#allocation5], 1
    %296 = vsyncpa %s295, 1

</llo_original>
